<compile_context>
chip_gen: v6e
topology: v6e:2x2x1
jax: 0.10.0
libtpu: 0.0.40
codegen_flags: <defaults>
</compile_context>

<pallas_src>
import functools

import jax
import jax.numpy as jnp
from jax.experimental import pallas as pl
from jax.experimental.pallas import tpu as pltpu


# ----------------------------------------------------------------------------
# Small path: whole operands live in VMEM, single kernel invocation (no grid).
# ----------------------------------------------------------------------------
def _linear_single_block_kernel(x_ref, w_ref, b_ref, o_ref):
    o_ref[...] = (
        jnp.dot(x_ref[...], w_ref[...], preferred_element_type=jnp.float32)
        + b_ref[...]
    ).astype(o_ref.dtype)


@jax.jit
def lr_forward_small(x, weight, bias):
    """out = x @ weight + bias, single VMEM-resident block, no grid."""
    B, K = x.shape
    _, N = weight.shape
    b2 = bias.reshape(1, N).astype(jnp.float32)
    bytes_accessed = 4 * (B * K + K * N + N + B * N)
    return pl.pallas_call(
        _linear_single_block_kernel,
        out_shape=jax.ShapeDtypeStruct((B, N), x.dtype),
        in_specs=[
            pl.BlockSpec(memory_space=pltpu.MemorySpace.VMEM),
            pl.BlockSpec(memory_space=pltpu.MemorySpace.VMEM),
            pl.BlockSpec(memory_space=pltpu.MemorySpace.VMEM),
        ],
        out_specs=pl.BlockSpec(memory_space=pltpu.MemorySpace.VMEM),
        cost_estimate=pl.CostEstimate(
            flops=2 * B * K * N, transcendentals=0, bytes_accessed=bytes_accessed
        ),
    )(x, weight, b2)


# ----------------------------------------------------------------------------
# General path: standard tiled matmul with a VMEM accumulator.
# ----------------------------------------------------------------------------
def _linear_tiled_kernel(x_ref, w_ref, b_ref, o_ref, acc_ref):
    k = pl.program_id(2)

    @pl.when(k == 0)
    def _():
        acc_ref[...] = jnp.zeros_like(acc_ref)

    acc_ref[...] += jnp.dot(
        x_ref[...], w_ref[...], preferred_element_type=jnp.float32
    )

    @pl.when(k == pl.num_programs(2) - 1)
    def _():
        # Bias applied once, in f32, only on the final K step.
        o_ref[...] = (acc_ref[...] + b_ref[...]).astype(o_ref.dtype)


def _round_up(n, m):
    return ((n + m - 1) // m) * m


def _pad_to(a, shape):
    pads = [(0, s - d) for d, s in zip(a.shape, shape)]
    if all(p == (0, 0) for p in pads):
        return a
    return jnp.pad(a, pads)


@functools.partial(jax.jit, static_argnames=("tm", "tn", "tk", "use_bf16"))
def lr_forward_tiled(x, weight, bias, *, tm=128, tn=256, tk=256, use_bf16=True):
    """Tiled Linear forward: out = x @ weight + bias.

    x:      (B, K)  weight: (K, N)  bias: (N,)  ->  (B, N)
    Tiles are conservative enough for v7x's 64 MiB VMEM; bf16 inputs (with f32
    accumulation) feed the 256-wide MXUs on v6e/v7x.
    """
    B, K = x.shape
    K2, N = weight.shape
    assert K == K2
    out_dtype = x.dtype

    if use_bf16:
        x = x.astype(jnp.bfloat16)
        weight = weight.astype(jnp.bfloat16)

    Bp, Kp, Np = _round_up(B, tm), _round_up(K, tk), _round_up(N, tn)
    x_p = _pad_to(x, (Bp, Kp))
    w_p = _pad_to(weight, (Kp, Np))
    b_p = _pad_to(bias.reshape(1, N).astype(jnp.float32), (1, Np))

    grid = (Bp // tm, Np // tn, Kp // tk)
    in_item = jnp.dtype(x_p.dtype).itemsize
    out_item = jnp.dtype(out_dtype).itemsize
    bytes_accessed = (
        Bp * Kp * in_item + Kp * Np * in_item + Np * 4 + Bp * Np * out_item
    )

    out_p = pl.pallas_call(
        _linear_tiled_kernel,
        out_shape=jax.ShapeDtypeStruct((Bp, Np), out_dtype),
        grid=grid,
        in_specs=[
            pl.BlockSpec((tm, tk), lambda i, j, k: (i, k)),
            pl.BlockSpec((tk, tn), lambda i, j, k: (k, j)),
            pl.BlockSpec((1, tn), lambda i, j, k: (0, j)),
        ],
        out_specs=pl.BlockSpec((tm, tn), lambda i, j, k: (i, j)),
        scratch_shapes=[pltpu.VMEM((tm, tn), jnp.float32)],
        compiler_params=pltpu.CompilerParams(
            dimension_semantics=("parallel", "parallel", "arbitrary"),
            vmem_limit_bytes=32 * 1024 * 1024,
        ),
        cost_estimate=pl.CostEstimate(
            flops=2 * Bp * Np * Kp,
            transcendentals=0,
            bytes_accessed=bytes_accessed,
        ),
    )(x_p, w_p, b_p)

    if (Bp, Np) != (B, N):
        out_p = out_p[:B, :N]
    return out_p


# ----------------------------------------------------------------------------
# Dispatcher: tiny problems go to the grid-less single-block kernel; anything
# that would not comfortably fit VMEM goes to the tiled kernel.
# (For sub-vreg work, plain `x @ w + b` under jit is cheapest of all; the Pallas
#  path is kept here so the kernel itself is exercised.)
# ----------------------------------------------------------------------------
def lr_forward(x, weight, bias):
    B, K = x.shape
    _, N = weight.shape
    vmem_bytes = 4 * (B * K + K * N + N + B * N)
    if vmem_bytes <= 4 * 1024 * 1024:
        return lr_forward_small(x, weight, bias)
    return lr_forward_tiled(x, weight, bias)


if __name__ == "__main__":
    # --- The module's own case: LR(input_size=1, output_size=1); x = [[1.],[2.]] ---
    input_size, output_size = 1, 1
    key = jax.random.PRNGKey(0)
    k_w, k_b, k_x2, k_w2, k_b2 = jax.random.split(key, 5)

    # Deterministic init mimicking nn.Linear: U(-1/sqrt(in), 1/sqrt(in))
    bound = 1.0 / (input_size ** 0.5)
    weight = jax.random.uniform(
        k_w, (input_size, output_size), jnp.float32, -bound, bound
    )
    bias = jax.random.uniform(k_b, (output_size,), jnp.float32, -bound, bound)
    x = jnp.array([[1.0], [2.0]], dtype=jnp.float32)

    out = lr_forward(x, weight, bias)
    jax.block_until_ready(out)

    ref = jnp.dot(x, weight, precision=jax.lax.Precision.HIGHEST) + bias
    assert out.shape == (2, 1)
    assert jnp.allclose(out, ref, atol=1e-4), (out, ref)

    # --- Exercise the general tiled path at a modest Linear shape ---
    B2, K2, N2 = 256, 512, 256
    x2 = jax.random.normal(k_x2, (B2, K2), jnp.float32)
    w2 = jax.random.normal(k_w2, (K2, N2), jnp.float32) / (K2 ** 0.5)
    b2 = jax.random.normal(k_b2, (N2,), jnp.float32)

    out2 = lr_forward_tiled(x2, w2, b2, use_bf16=True)
    jax.block_until_ready(out2)

    ref2 = (
        jnp.dot(
            x2.astype(jnp.bfloat16).astype(jnp.float32),
            w2.astype(jnp.bfloat16).astype(jnp.float32),
            precision=jax.lax.Precision.HIGHEST,
        )
        + b2
    )
    assert out2.shape == (B2, N2)
    assert jnp.allclose(out2, ref2, atol=5e-2, rtol=5e-2), float(
        jnp.max(jnp.abs(out2 - ref2))
    )

    print("KERNEL_OK")
</pallas_src>

<mosaic_0001>
module attributes {stable_mosaic.version = 11 : i64} {
  func.func @_linear_single_block_kernel(%arg0: memref<2x1xf32, #tpu.memory_space<vmem>>, %arg1: memref<1x1xf32, #tpu.memory_space<vmem>>, %arg2: memref<1x1xf32, #tpu.memory_space<vmem>>, %arg3: memref<2x1xf32, #tpu.memory_space<vmem>>) attributes {dimension_semantics = [], scalar_prefetch = 0 : i64, scratch_operands = 0 : i64, tpu.core_type = #tpu.core_type<tc>} {
    %c0 = arith.constant 0 : index
    %c0_0 = arith.constant 0 : index
    %0 = vector.load %arg0[%c0, %c0_0] : memref<2x1xf32, #tpu.memory_space<vmem>>, vector<2x1xf32>
    %c0_1 = arith.constant 0 : index
    %c0_2 = arith.constant 0 : index
    %1 = vector.load %arg1[%c0_1, %c0_2] : memref<1x1xf32, #tpu.memory_space<vmem>>, vector<1x1xf32>
    %cst = arith.constant dense<0.000000e+00> : vector<2x1xf32>
    %2 = tpu.matmul %0, %1, %cst {dimension_numbers = #tpu.dot_dimension_numbers<[1], [0], [0], [1], [0, 0, 1, 1], [], []>} : vector<2x1xf32>, vector<1x1xf32>, vector<2x1xf32> -> vector<2x1xf32>
    %c0_3 = arith.constant 0 : index
    %c0_4 = arith.constant 0 : index
    %3 = vector.load %arg2[%c0_3, %c0_4] : memref<1x1xf32, #tpu.memory_space<vmem>>, vector<1x1xf32>
    %4 = vector.broadcast %3 : vector<1x1xf32> to vector<2x1xf32>
    %5 = arith.addf %2, %4 : vector<2x1xf32>
    %c0_5 = arith.constant 0 : index
    %c0_6 = arith.constant 0 : index
    %6 = vector.load %arg3[%c0_5, %c0_6] : memref<2x1xf32, #tpu.memory_space<vmem>>, vector<2x1xf32>
    tpu.vector_store %arg3[%c0_5, %c0_6], %5 {strides = array<i32>} : memref<2x1xf32, #tpu.memory_space<vmem>>, vector<2x1xf32>,
    return
  }
}

</mosaic_0001>

<llo_original>
// kernel: lr_forward_small.1
$region0: #{lr_forward_small.1}
  #allocation0 [shape = 'u32[]', space=smem, size = 0x4, offset = 0x4, fixed_abs, tag = 'smem constant byte address 0x4 - core index']
  #allocation1 [shape = 'u32[144,128]{1,0:T(1,128)}', space=vmem, size = 0x12000, scoped, tag = 'internal scratch']
  #allocation2 [shape = 'f32[1,1]{1,0:T(1,128)S(1)}', space=vmem, size = 0x200, scoped, tag = 'scoped memory for lr_forward_small.1']
  #allocation3 [shape = 'f32[1,1]{1,0:T(1,128)S(1)}', space=vmem, size = 0x200, scoped, tag = 'scoped memory for lr_forward_small.1']
  %s0 = inlined_call_operand.vmem [shape: f32[2,1], index: 0, kind: input, shape index: {}]
  %s1 = inlined_call_operand.<no memory space> [shape: f32[1,1], index: 1, kind: input, shape index: {}]
  %s2 = inlined_call_operand.<no memory space> [shape: f32[1,1], index: 2, kind: input, shape index: {}]
  %s3 = inlined_call_operand.vmem [shape: f32[2,1], index: 3, kind: output, shape index: {}]
  %s4 = sld [smem:[#allocation0]]
  $region22: #{lr_forward_small.1} parent=0
    _
  %s6 = ssub.s32 1, %s4
  %s7 = scalar_select 0, %s6, %s4
  %v8 = vstv %s1
  %9 = vst [vmem:[#allocation2] sm:$0x1] %v8
  %v10 = vstv %s2
  %11 = vst [vmem:[#allocation3] sm:$0x1] %v10
  // Predicated region
  $region2: #{lr_forward_small.1} parent=0 // pred_check
    _
  $region3: #{lr_forward_small.1} parent=0 // pred_check_branch
    %13 = sbr.rel (0) target = $region5
  $region4: #{lr_forward_small.1} parent=0 // pred_region
    _
  $region5: #{lr_forward_small.1} parent=0 // pred_fallthru
    _
  // Predicated region
  $region6: #{lr_forward_small.1} parent=0 // pred_check
    _
  $region7: #{lr_forward_small.1} parent=0 // pred_check_branch
    %15 = sbr.rel (0) target = $region9
  $region8: #{lr_forward_small.1} parent=0 // pred_region
    _
  $region9: #{lr_forward_small.1} parent=0 // pred_fallthru
    _
  // Predicated region
  $region10: #{lr_forward_small.1} parent=0 // pred_check
    _
  $region11: #{lr_forward_small.1} parent=0 // pred_check_branch
    %17 = sbr.rel (0) target = $region13
  $region12: #{lr_forward_small.1} parent=0 // pred_region
    _
  $region13: #{lr_forward_small.1} parent=0 // pred_fallthru
    _
  %v18 = vld [vmem:[%s0] sm:$0x3]
  %v19 = vld [vmem:[#allocation2] sm:$0x1]
  %v20 = vld [vmem:[#allocation3] sm:$0x1]
  %v22 = vlaneseq
  %v23 = vshrl.u32 %v22, 7
  %v24 = vsub.s32 0, %v23
  %v25 = vrot.slane %v20, %v24
  %vm27 = vcmask 7168
  %v29 = vsel %vm27, %v18, 0
  %vm31 = vcmask 1040384
  %v33 = vsel %vm31, %v19, 0
  %35 = vmatprep.subr.mxu0 0.0
  %36 = vmatpush1.msra.mxu0 0.0
  %37 = vmatprep.subr.mxu0 0.0
  %38 = vmatpush1.msra.mxu0 0.0
  %39 = vmatprep.subr.mxu0 0.0
  %40 = vmatpush1.msra.mxu0 0.0
  %41 = vmatprep.subr.mxu0 0.0
  %42 = vmatpush1.msra.mxu0 0.0
  %43 = vmatprep.subr.mxu0 0.0
  %44 = vmatpush1.msra.mxu0 0.0
  %45 = vmatprep.subr.mxu0 0.0
  %46 = vmatpush1.msra.mxu0 0.0
  %47 = vmatprep.subr.mxu0 0.0
  %48 = vmatpush1.msra.mxu0 0.0
  %49 = vmatprep.subr.mxu0 0.0
  %50 = vmatpush1.msra.mxu0 0.0
  %51 = vmatprep.subr.mxu0 0.0
  %52 = vmatpush1.msra.mxu0 0.0
  %53 = vmatprep.subr.mxu0 0.0
  %54 = vmatpush1.msra.mxu0 0.0
  %55 = vmatprep.subr.mxu0 0.0
  %56 = vmatpush1.msra.mxu0 0.0
  %57 = vmatprep.subr.mxu0 0.0
  %58 = vmatpush1.msra.mxu0 0.0
  %59 = vmatprep.subr.mxu0 0.0
  %60 = vmatpush1.msra.mxu0 0.0
  %61 = vmatprep.subr.mxu0 0.0
  %62 = vmatpush1.msra.mxu0 0.0
  %63 = vmatprep.subr.mxu0 0.0
  %64 = vmatpush1.msra.mxu0 0.0
  %65 = vmatprep.subr.mxu0 0.0
  %66 = vmatpush1.msra.mxu0 %v33
  %67 = vmatprep.subr.mxu0 0.0
  %68 = vmatpush2.msra.mxu0 0.0
  %69 = vmatprep.subr.mxu0 0.0
  %70 = vmatpush2.msra.mxu0 0.0
  %71 = vmatprep.subr.mxu0 0.0
  %72 = vmatpush2.msra.mxu0 0.0
  %73 = vmatprep.subr.mxu0 0.0
  %74 = vmatpush2.msra.mxu0 0.0
  %75 = vmatprep.subr.mxu0 0.0
  %76 = vmatpush2.msra.mxu0 0.0
  %77 = vmatprep.subr.mxu0 0.0
  %78 = vmatpush2.msra.mxu0 0.0
  %79 = vmatprep.subr.mxu0 0.0
  %80 = vmatpush2.msra.mxu0 0.0
  %81 = vmatprep.subr.mxu0 0.0
  %82 = vmatpush2.msra.mxu0 0.0
  %83 = vmatprep.subr.mxu0 0.0
  %84 = vmatpush2.msra.mxu0 0.0
  %85 = vmatprep.subr.mxu0 0.0
  %86 = vmatpush2.msra.mxu0 0.0
  %87 = vmatprep.subr.mxu0 0.0
  %88 = vmatpush2.msra.mxu0 0.0
  %89 = vmatprep.subr.mxu0 0.0
  %90 = vmatpush2.msra.mxu0 0.0
  %91 = vmatprep.subr.mxu0 0.0
  %92 = vmatpush2.msra.mxu0 0.0
  %93 = vmatprep.subr.mxu0 0.0
  %94 = vmatpush2.msra.mxu0 0.0
  %95 = vmatprep.subr.mxu0 0.0
  %96 = vmatpush2.msra.mxu0 0.0
  %97 = vmatprep.subr.mxu0 0.0
  %98 = vmatpush2.msra.mxu0 0.0
  %99 = vmatprep.mubr.f32.mxu0 0.0
  %100 = vmatmul.mubr.f32.gmra.mxu0 %v29
  %v101 = vpop.f32.mrf.mxu0
  %v102 = vadd.f32 %v25, %v101
  %v103 = vpop.f32.mrf.mxu0
  %104 = vdwg.mxu0
  %vm105 = vcmask 1024
  %106 = vst.msk [vmem:[%s3] sm:$0x3] %vm105, %v102
  // Predicated region
  $region14: #{lr_forward_small.1} parent=0 // pred_check
    _
  $region15: #{lr_forward_small.1} parent=0 // pred_check_branch
    %108 = sbr.rel (0) target = $region17
  $region16: #{lr_forward_small.1} parent=0 // pred_region
    _
  $region17: #{lr_forward_small.1} parent=0 // pred_fallthru
    _
  // Predicated region
  $region18: #{lr_forward_small.1} parent=0 // pred_check
    _
  $region19: #{lr_forward_small.1} parent=0 // pred_check_branch
    %110 = sbr.rel (0) target = $region21
  $region20: #{lr_forward_small.1} parent=0 // pred_region
    _
  $region21: #{lr_forward_small.1} parent=0 // pred_fallthru
    _

</llo_original>
